<compile_context>
chip_gen: v6e
topology: v6e:2x2x1
jax: 0.10.0
libtpu: 0.0.40
codegen_flags: <defaults>
</compile_context>

<pallas_src>
import jax
import jax.numpy as jnp
from jax.experimental import pallas as pl
from jax.experimental.pallas import tpu as pltpu

LANE = 128
SUBLANE = 8
_TARGET_BLOCK_BYTES = 2 << 20  # ~2 MiB per input block per array


def _ddpm_noise_kernel(sa_ref, s1ma_ref, x_ref, eps_ref, o_ref):
    """o = sqrt_a * x + sqrt_1ma * eps for one (bb, rb, 128) tile.

    sa_ref / s1ma_ref are (bb, 1, 1) per-sample scales; they broadcast across the
    sublane (rb) and lane (128) dims, so this is one fused VPU sweep per block.
    """
    x = x_ref[...].astype(jnp.float32)
    e = eps_ref[...].astype(jnp.float32)
    o_ref[...] = (sa_ref[...] * x + s1ma_ref[...] * e).astype(o_ref.dtype)


def ddpm_forward(x, t, eps, alpha_bars):
    """Pallas implementation of DDPM.forward (the noising step).

    x, eps: (B, C, H, W);  t: (B,) int;  alpha_bars: (n_steps,) float.
    """
    B, C, H, W = x.shape
    n = C * H * W

    # B-element gather + 2*B sqrts: negligible, XLA fuses it into one tiny op.
    a = alpha_bars[t].astype(jnp.float32)
    sqrt_a = jnp.sqrt(a).reshape(B, 1, 1)
    sqrt_1ma = jnp.sqrt(1.0 - a).reshape(B, 1, 1)

    if n % LANE != 0:
        # TODO(synk): per-sample sizes not divisible by 128 fall back to plain XLA;
        # padding a Pallas block is not worth it for this memcpy-class op.
        return (sqrt_a.reshape(B, 1, 1, 1) * x
                + sqrt_1ma.reshape(B, 1, 1, 1) * eps).astype(x.dtype)

    R = n // LANE
    x3 = x.reshape(B, R, LANE)
    e3 = eps.reshape(B, R, LANE)

    itemsize = jnp.dtype(x.dtype).itemsize
    row_bytes = R * LANE * itemsize

    if row_bytes <= _TARGET_BLOCK_BYTES:
        # Whole per-sample slab fits: tile only the batch axis.
        bb = max(1, min(B, _TARGET_BLOCK_BYTES // row_bytes))
        rb = R
    else:
        # Huge images: one sample per block, tile the feature axis in multiples of 8
        # sublanes so every block stays a stack of full (8,128) vreg tiles.
        bb = 1
        rb_raw = max(1, _TARGET_BLOCK_BYTES // (LANE * itemsize))
        rb = min(R, max(SUBLANE, (rb_raw // SUBLANE) * SUBLANE))

    grid = (pl.cdiv(B, bb), pl.cdiv(R, rb))
    block_bytes = bb * rb * LANE * itemsize
    # 3 big arrays x 2 pipeline buffers per block + slack; clamp so it is safe on
    # v5e (128 MiB physical), v6e (128 MiB) and v7x (64 MiB physical VMEM).
    vmem_limit = int(min(max(3 * 2 * block_bytes + (4 << 20), 16 << 20), 48 << 20))

    data_spec = pl.BlockSpec((bb, rb, LANE), lambda gb, gr: (gb, gr, 0))
    scale_spec = pl.BlockSpec((bb, 1, 1), lambda gb, gr: (gb, 0, 0))

    out3 = pl.pallas_call(
        _ddpm_noise_kernel,
        out_shape=jax.ShapeDtypeStruct((B, R, LANE), x.dtype),
        grid_spec=pltpu.PrefetchScalarGridSpec(
            num_scalar_prefetch=0,
            grid=grid,
            in_specs=[scale_spec, scale_spec, data_spec, data_spec],
            out_specs=data_spec,
        ),
        compiler_params=pltpu.CompilerParams(
            dimension_semantics=("parallel", "parallel"),
            vmem_limit_bytes=vmem_limit,
        ),
        # TODO(synk): if the caller never reuses x after noising, alias it with the
        # output (input_output_aliases) to cut HBM traffic by ~1/3; eps is usually
        # kept as the loss target, so no alias by default.
    )(sqrt_a, sqrt_1ma, x3, e3)

    return out3.reshape(B, C, H, W)


def make_ddpm_schedule(n_steps, min_beta=0.0001, max_beta=0.02):
    """Deterministic schedule params, mirroring DDPM.__init__."""
    betas = jnp.linspace(min_beta, max_beta, n_steps, dtype=jnp.float32)
    alphas = 1.0 - betas
    alpha_bars = jnp.cumprod(alphas)
    return betas, alphas, alpha_bars


if __name__ == "__main__":
    # TODO(synk): DDPM.backward delegates to an arbitrary external UNet; only the
    # diffusion noising forward pass is implemented here.
    key = jax.random.PRNGKey(0)
    k_x, k_eps, k_t = jax.random.split(key, 3)

    B, C, H, W = 2, 4, 16, 16
    n_steps = 100  # unet.em1.n_steps analogue

    x = jax.random.normal(k_x, (B, C, H, W), dtype=jnp.float32)
    eps = jax.random.normal(k_eps, (B, C, H, W), dtype=jnp.float32)
    t = jax.random.randint(k_t, (B,), 0, n_steps, dtype=jnp.int32)

    _, _, alpha_bars = make_ddpm_schedule(n_steps)

    out = jax.jit(ddpm_forward)(x, t, eps, alpha_bars)
    jax.block_until_ready(out)

    # Reference check (pure JAX), same math as the PyTorch forward.
    a = alpha_bars[t].reshape(-1, 1, 1, 1)
    ref = jnp.sqrt(a) * x + jnp.sqrt(1.0 - a) * eps
    assert out.shape == (B, C, H, W)
    assert jnp.allclose(out, ref, atol=1e-6, rtol=1e-6)

    print("KERNEL_OK")
</pallas_src>

<mosaic_0001>
module attributes {stable_mosaic.version = 11 : i64} {
  func.func @_ddpm_noise_kernel(%arg0: i32, %arg1: i32, %arg2: memref<2x1x1xf32, #tpu.memory_space<vmem>>, %arg3: memref<2x1x1xf32, #tpu.memory_space<vmem>>, %arg4: memref<2x8x128xf32, #tpu.memory_space<vmem>>, %arg5: memref<2x8x128xf32, #tpu.memory_space<vmem>>, %arg6: memref<2x8x128xf32, #tpu.memory_space<vmem>>) attributes {dimension_semantics = [#tpu.dimension_semantics<parallel>, #tpu.dimension_semantics<parallel>], iteration_bounds = array<i64: 1, 1>, scalar_prefetch = 0 : i64, scratch_operands = 0 : i64, tpu.core_type = #tpu.core_type<tc>, window_params = [{transform_indices = @transform_0, window_bounds = array<i64: 2, 1, 1>}, {transform_indices = @transform_1, window_bounds = array<i64: 2, 1, 1>}, {transform_indices = @transform_2, window_bounds = array<i64: 2, 8, 128>}, {transform_indices = @transform_3, window_bounds = array<i64: 2, 8, 128>}, {transform_indices = @transform_4, window_bounds = array<i64: 2, 8, 128>}]} {
    %c0 = arith.constant 0 : index
    %c0_0 = arith.constant 0 : index
    %c0_1 = arith.constant 0 : index
    %0 = vector.load %arg4[%c0, %c0_0, %c0_1] : memref<2x8x128xf32, #tpu.memory_space<vmem>>, vector<2x8x128xf32>
    %c0_2 = arith.constant 0 : index
    %c0_3 = arith.constant 0 : index
    %c0_4 = arith.constant 0 : index
    %1 = vector.load %arg5[%c0_2, %c0_3, %c0_4] : memref<2x8x128xf32, #tpu.memory_space<vmem>>, vector<2x8x128xf32>
    %c0_5 = arith.constant 0 : index
    %c0_6 = arith.constant 0 : index
    %c0_7 = arith.constant 0 : index
    %2 = vector.load %arg2[%c0_5, %c0_6, %c0_7] : memref<2x1x1xf32, #tpu.memory_space<vmem>>, vector<2x1x1xf32>
    %3 = vector.broadcast %2 : vector<2x1x1xf32> to vector<2x8x128xf32>
    %4 = arith.mulf %3, %0 : vector<2x8x128xf32>
    %c0_8 = arith.constant 0 : index
    %c0_9 = arith.constant 0 : index
    %c0_10 = arith.constant 0 : index
    %5 = vector.load %arg3[%c0_8, %c0_9, %c0_10] : memref<2x1x1xf32, #tpu.memory_space<vmem>>, vector<2x1x1xf32>
    %6 = vector.broadcast %5 : vector<2x1x1xf32> to vector<2x8x128xf32>
    %7 = arith.mulf %6, %1 : vector<2x8x128xf32>
    %8 = arith.addf %4, %7 : vector<2x8x128xf32>
    %c0_11 = arith.constant 0 : index
    %c0_12 = arith.constant 0 : index
    %c0_13 = arith.constant 0 : index
    %9 = vector.load %arg6[%c0_11, %c0_12, %c0_13] : memref<2x8x128xf32, #tpu.memory_space<vmem>>, vector<2x8x128xf32>
    tpu.vector_store %arg6[%c0_11, %c0_12, %c0_13], %8 {strides = array<i32>} : memref<2x8x128xf32, #tpu.memory_space<vmem>>, vector<2x8x128xf32>,
    return
  }
  func.func @transform_0(%arg0: i32, %arg1: i32) -> (i32, i32, i32) {
    %c0_i32 = arith.constant 0 : i32
    %c0_i32_0 = arith.constant 0 : i32
    %c0_i32_1 = arith.constant 0 : i32
    return %arg0, %c0_i32, %c0_i32_0 : i32, i32, i32
  }
  func.func @transform_1(%arg0: i32, %arg1: i32) -> (i32, i32, i32) {
    %c0_i32 = arith.constant 0 : i32
    %c0_i32_0 = arith.constant 0 : i32
    %c0_i32_1 = arith.constant 0 : i32
    return %arg0, %c0_i32, %c0_i32_0 : i32, i32, i32
  }
  func.func @transform_2(%arg0: i32, %arg1: i32) -> (i32, i32, i32) {
    %c0_i32 = arith.constant 0 : i32
    %c0_i32_0 = arith.constant 0 : i32
    return %arg0, %arg1, %c0_i32 : i32, i32, i32
  }
  func.func @transform_3(%arg0: i32, %arg1: i32) -> (i32, i32, i32) {
    %c0_i32 = arith.constant 0 : i32
    %c0_i32_0 = arith.constant 0 : i32
    return %arg0, %arg1, %c0_i32 : i32, i32, i32
  }
  func.func @transform_4(%arg0: i32, %arg1: i32) -> (i32, i32, i32) {
    %c0_i32 = arith.constant 0 : i32
    %c0_i32_0 = arith.constant 0 : i32
    return %arg0, %arg1, %c0_i32 : i32, i32, i32
  }
}

</mosaic_0001>

<llo_original>
// kernel: ddpm_forward.1
$region0: #{ddpm_forward.1}
  #allocation0 [shape = 'u32[]', space=smem, size = 0x4, offset = 0x4, fixed_abs, tag = 'smem constant byte address 0x4 - core index']
  #allocation1 [shape = 'u32[144,128]{1,0:T(1,128)}', space=vmem, size = 0x12000, scoped, tag = 'internal scratch']
  %s0 = inlined_call_operand.vmem [shape: f32[2,1,1], index: 0, kind: input, shape index: {}]
  %s1 = inlined_call_operand.vmem [shape: f32[2,1,1], index: 1, kind: input, shape index: {}]
  %s2 = inlined_call_operand.vmem [shape: f32[2,8,128], index: 2, kind: input, shape index: {}]
  %s3 = inlined_call_operand.vmem [shape: f32[2,8,128], index: 3, kind: input, shape index: {}]
  %s4 = inlined_call_operand.vmem [shape: f32[2,8,128], index: 4, kind: output, shape index: {}]
  %s5 = sld [smem:[#allocation0]]
  $region26: #{ddpm_forward.1} parent=0
    _
  %s7 = ssub.s32 1, %s5
  %s8 = scalar_select 0, %s7, %s5
  // Predicated region
  $region2: #{ddpm_forward.1} parent=0 // pred_check
    _
  $region3: #{ddpm_forward.1} parent=0 // pred_check_branch
    %10 = sbr.rel (0) target = $region5
  $region4: #{ddpm_forward.1} parent=0 // pred_region
    _
  $region5: #{ddpm_forward.1} parent=0 // pred_fallthru
    _
  // Predicated region
  $region6: #{ddpm_forward.1} parent=0 // pred_check
    _
  $region7: #{ddpm_forward.1} parent=0 // pred_check_branch
    %12 = sbr.rel (0) target = $region9
  $region8: #{ddpm_forward.1} parent=0 // pred_region
    _
  $region9: #{ddpm_forward.1} parent=0 // pred_fallthru
    _
  // Predicated region
  $region10: #{ddpm_forward.1} parent=0 // pred_check
    _
  $region11: #{ddpm_forward.1} parent=0 // pred_check_branch
    %14 = sbr.rel (0) target = $region13
  $region12: #{ddpm_forward.1} parent=0 // pred_region
    _
  $region13: #{ddpm_forward.1} parent=0 // pred_fallthru
    _
  // Predicated region
  $region14: #{ddpm_forward.1} parent=0 // pred_check
    _
  $region15: #{ddpm_forward.1} parent=0 // pred_check_branch
    %16 = sbr.rel (0) target = $region17
  $region16: #{ddpm_forward.1} parent=0 // pred_region
    _
  $region17: #{ddpm_forward.1} parent=0 // pred_fallthru
    _
  %v17 = vld [vmem:[%s2] sm:$0xff]
  %v18 = vld [vmem:[%s2 + $0x8] sm:$0xff]
  %v19 = vld [vmem:[%s3] sm:$0xff]
  %v20 = vld [vmem:[%s3 + $0x8] sm:$0xff]
  %v21 = vld [vmem:[%s0] sm:$0x1]
  %v22 = vld [vmem:[%s0 + $0x1] sm:$0x1]
  %v25 = vlaneseq
  %v26 = vshrl.u32 %v25, 7
  %v27 = vsub.s32 0, %v26
  %v28 = vrot.slane %v21, %v27
  %v29 = vlaneseq
  %v30 = vshrl.u32 %v29, 7
  %v31 = vsub.s32 0, %v30
  %v32 = vrot.slane %v22, %v31
  %33 = vset.pattern.permute.xlu0 0
  %34 = vperm.xlu0 %33, %v28
  %v35 = vpop.permute.xlu0 %34
  %37 = vset.pattern.permute.xlu0 0
  %38 = vperm.xlu0 %37, %v32
  %v39 = vpop.permute.xlu0 %38
  %v41 = vmul.f32 %v35, %v17
  %v42 = vmul.f32 %v39, %v18
  %v43 = vld [vmem:[%s1] sm:$0x1]
  %v44 = vld [vmem:[%s1 + $0x1] sm:$0x1]
  %v47 = vlaneseq
  %v48 = vshrl.u32 %v47, 7
  %v49 = vsub.s32 0, %v48
  %v50 = vrot.slane %v43, %v49
  %v51 = vlaneseq
  %v52 = vshrl.u32 %v51, 7
  %v53 = vsub.s32 0, %v52
  %v54 = vrot.slane %v44, %v53
  %55 = vset.pattern.permute.xlu0 0
  %56 = vperm.xlu0 %55, %v50
  %v57 = vpop.permute.xlu0 %56
  %59 = vset.pattern.permute.xlu0 0
  %60 = vperm.xlu0 %59, %v54
  %v61 = vpop.permute.xlu0 %60
  %v63 = vmul.f32 %v57, %v19
  %v64 = vmul.f32 %v61, %v20
  %v65 = vadd.f32 %v41, %v63
  %v66 = vadd.f32 %v42, %v64
  %67 = vst [vmem:[%s4] sm:$0xff] %v65
  %68 = vst [vmem:[%s4 + $0x8] sm:$0xff] %v66
  // Predicated region
  $region18: #{ddpm_forward.1} parent=0 // pred_check
    _
  $region19: #{ddpm_forward.1} parent=0 // pred_check_branch
    %70 = sbr.rel (0) target = $region21
  $region20: #{ddpm_forward.1} parent=0 // pred_region
    _
  $region21: #{ddpm_forward.1} parent=0 // pred_fallthru
    _
  // Predicated region
  $region22: #{ddpm_forward.1} parent=0 // pred_check
    _
  $region23: #{ddpm_forward.1} parent=0 // pred_check_branch
    %72 = sbr.rel (0) target = $region25
  $region24: #{ddpm_forward.1} parent=0 // pred_region
    _
  $region25: #{ddpm_forward.1} parent=0 // pred_fallthru
    _

</llo_original>
